<compile_context>
chip_gen: v7x
topology: tpu7x:2x2x1
jax: 0.10.0
libtpu: 0.0.40
codegen_flags: <defaults>
</compile_context>

<pallas_src>
import jax
import jax.numpy as jnp
from jax import lax
from jax.experimental import pallas as pl
from jax.experimental.pallas import tpu as pltpu  # noqa: F401  (TPU backend assumed)

EPS = 1e-5


def _disc_kernel(refl_ref, soc_ref,
                 w1r_ref, w1s_ref, g1_ref, be1_ref,
                 w2_ref, g2_ref, be2_ref,
                 w3_ref, b3_ref,
                 o_ref):
    # Cast activations in-kernel (VPU, hidden by the pipeline), not in the wrapper.
    refl = refl_ref[...].astype(jnp.bfloat16)              # (N, input_dim) MXU operand
    soc = soc_ref[...].astype(jnp.float32)                 # (N, soc_dim)   VPU path
    inv_n = 1.0 / refl.shape[0]

    # ---- Layer 1: Linear(in_dim+soc_dim, 256); bias cancelled by training-mode BN.
    # Reflection half on the MXU (bf16 in, f32 acc); soc half rank-1 on the VPU.
    h1 = jnp.dot(refl, w1r_ref[...], preferred_element_type=jnp.float32)
    w1s = w1s_ref[...]                                      # (soc_dim, 256) f32
    for d in range(soc.shape[1]):                           # static unroll; soc_dim == 1
        h1 = h1 + soc[:, d:d + 1] * w1s[d:d + 1, :]
    # TODO(synk): if soc_dim grows past ~4, fold soc back into the MXU matmul
    # (pad K to a multiple of 8) instead of stacking VPU broadcast passes.

    # ---- BatchNorm1d(256) training mode (biased variance, f32) + ReLU ----
    m1 = jnp.sum(h1, axis=0, keepdims=True) * inv_n
    c1 = h1 - m1
    v1 = jnp.sum(c1 * c1, axis=0, keepdims=True) * inv_n
    s1 = lax.rsqrt(v1 + EPS) * g1_ref[...]                  # fold scale at (1, 256)
    h1 = jnp.maximum(c1 * s1 + be1_ref[...], 0.0)

    # ---- Layer 2: Linear(256, 128) (bias cancelled) + BatchNorm1d(128) + ReLU ----
    h2 = jnp.dot(h1.astype(jnp.bfloat16), w2_ref[...],
                 preferred_element_type=jnp.float32)
    m2 = jnp.sum(h2, axis=0, keepdims=True) * inv_n
    c2 = h2 - m2
    v2 = jnp.sum(c2 * c2, axis=0, keepdims=True) * inv_n
    s2 = lax.rsqrt(v2 + EPS) * g2_ref[...]
    h2 = jnp.maximum(c2 * s2 + be2_ref[...], 0.0)

    # ---- Layer 3: Linear(128, 1) + Sigmoid (VPU mul + lane reduce, not MXU) ----
    logit = jnp.sum(h2 * w3_ref[...], axis=-1, keepdims=True) + b3_ref[...]
    o_ref[...] = jax.nn.sigmoid(logit)


def conditional_discriminator(reflection, soc, params):
    """reflection: (N, input_dim), soc: (N, soc_dim) -> (N, 1) float32."""
    n = reflection.shape[0]
    if n < 2:
        # PyTorch BatchNorm1d raises for a size-1 batch in training mode.
        raise ValueError("ConditionalDiscriminator (training-mode BatchNorm) "
                         "requires batch size > 1.")
    args = (reflection, soc,
            params["w1_refl"], params["w1_soc"], params["g1"], params["be1"],
            params["w2"], params["g2"], params["be2"],
            params["w3_row"], params["b3"])

    def full(a):
        return pl.BlockSpec(a.shape, lambda: (0,) * a.ndim)

    return pl.pallas_call(
        _disc_kernel,
        out_shape=jax.ShapeDtypeStruct((n, 1), jnp.float32),
        grid=(),
        in_specs=[full(a) for a in args],
        out_specs=pl.BlockSpec((n, 1), lambda: (0, 0)),
    )(*args)


def init_params(key, input_dim, soc_dim):
    """PyTorch default init: Linear W,b ~ U(-1/sqrt(fan_in), 1/sqrt(fan_in));
    BatchNorm gamma=1, beta=0.  Layer-1 weight is pre-split so that
    cat((refl, soc), 1) @ w1 == refl @ w1_refl + soc @ w1_soc.
    Matmul weights also get bf16 compute copies for the kernel."""
    in_dim = input_dim + soc_dim
    ks = jax.random.split(key, 6)

    def linear(kw, kb, fan_in, fan_out):
        bound = fan_in ** -0.5
        w = jax.random.uniform(kw, (fan_in, fan_out), jnp.float32, -bound, bound)
        b = jax.random.uniform(kb, (1, fan_out), jnp.float32, -bound, bound)
        return w, b

    w1, b1 = linear(ks[0], ks[1], in_dim, 256)
    w2, b2 = linear(ks[2], ks[3], 256, 128)
    w3, b3 = linear(ks[4], ks[5], 128, 1)
    return {
        # bf16 compute copies streamed to the kernel's MXU matmuls
        "w1_refl": w1[:input_dim].astype(jnp.bfloat16),
        "w2": w2.astype(jnp.bfloat16),
        # f32 masters (reference only)
        "w1_refl_f32": w1[:input_dim], "w2_f32": w2,
        # soc column stays f32 (VPU path, ~1 KiB)
        "w1_soc": w1[input_dim:],
        # pre-BN biases: reference only -- the kernel drops them (BN cancels them)
        "b1": b1, "b2": b2,
        "g1": jnp.ones((1, 256), jnp.float32), "be1": jnp.zeros((1, 256), jnp.float32),
        "g2": jnp.ones((1, 128), jnp.float32), "be2": jnp.zeros((1, 128), jnp.float32),
        "w3_row": w3.T,   # (1, 128) row form for the VPU tail
        "b3": b3,
    }


def reference_matched(reflection, soc, p):
    """Pure-JAX reference with the kernel's numerics (bf16 matmul operands,
    f32 accumulation, biases dropped) -- tight-tolerance structural check."""
    h = jnp.dot(reflection.astype(jnp.bfloat16), p["w1_refl"],
                preferred_element_type=jnp.float32)
    h = h + soc.astype(jnp.float32) @ p["w1_soc"]
    m = jnp.mean(h, 0, keepdims=True)
    v = jnp.mean((h - m) ** 2, 0, keepdims=True)
    h = jnp.maximum((h - m) * lax.rsqrt(v + EPS) * p["g1"] + p["be1"], 0.0)
    h = jnp.dot(h.astype(jnp.bfloat16), p["w2"], preferred_element_type=jnp.float32)
    m = jnp.mean(h, 0, keepdims=True)
    v = jnp.mean((h - m) ** 2, 0, keepdims=True)
    h = jnp.maximum((h - m) * lax.rsqrt(v + EPS) * p["g2"] + p["be2"], 0.0)
    return jax.nn.sigmoid(jnp.sum(h * p["w3_row"], axis=-1, keepdims=True) + p["b3"])


def reference_pytorch_f32(reflection, soc, p):
    """Full-f32 PyTorch training-mode forward (concat + biases included),
    used with a bf16-appropriate tolerance."""
    w1 = jnp.concatenate([p["w1_refl_f32"], p["w1_soc"]], axis=0)
    x = jnp.concatenate([reflection.astype(jnp.float32),
                         soc.astype(jnp.float32)], axis=1)
    h = x @ w1 + p["b1"]
    m, v = jnp.mean(h, 0, keepdims=True), jnp.var(h, 0, keepdims=True)
    h = jnp.maximum((h - m) / jnp.sqrt(v + EPS) * p["g1"] + p["be1"], 0.0)
    h = h @ p["w2_f32"] + p["b2"]
    m, v = jnp.mean(h, 0, keepdims=True), jnp.var(h, 0, keepdims=True)
    h = jnp.maximum((h - m) / jnp.sqrt(v + EPS) * p["g2"] + p["be2"], 0.0)
    return jax.nn.sigmoid(jnp.sum(h * p["w3_row"], axis=-1, keepdims=True) + p["b3"])


if __name__ == "__main__":
    key = jax.random.PRNGKey(0)
    k_refl, k_soc, k_param = jax.random.split(key, 3)

    batch = 8          # must be > 1 for BatchNorm batch statistics
    input_dim = 16     # synthetic spectral-reflection feature count
    soc_dim = 1

    reflection = jax.random.normal(k_refl, (batch, input_dim), jnp.float32)
    soc = jax.random.normal(k_soc, (batch, soc_dim), jnp.float32)
    params = init_params(k_param, input_dim, soc_dim)

    out = jax.block_until_ready(conditional_discriminator(reflection, soc, params))
    assert out.shape == (batch, 1)

    # Structural correctness: same numerics as the kernel (bf16 weights, f32 BN).
    ref_m = reference_matched(reflection, soc, params)
    assert jnp.allclose(out, ref_m, atol=1e-4, rtol=1e-4), \
        "mismatch vs bf16-matched JAX reference"

    # Semantics vs the full-f32 PyTorch forward (bf16 weight rounding tolerance).
    ref_f = reference_pytorch_f32(reflection, soc, params)
    assert jnp.allclose(out, ref_f, atol=5e-2), \
        "mismatch vs f32 PyTorch-semantics reference"

    print("KERNEL_OK")
</pallas_src>

<mosaic_0001>
module attributes {stable_mosaic.version = 11 : i64} {
  func.func @_disc_kernel(%arg0: memref<8x16xf32, #tpu.memory_space<vmem>>, %arg1: memref<8x1xf32, #tpu.memory_space<vmem>>, %arg2: memref<16x256xbf16, #tpu.memory_space<vmem>>, %arg3: memref<1x256xf32, #tpu.memory_space<vmem>>, %arg4: memref<1x256xf32, #tpu.memory_space<vmem>>, %arg5: memref<1x256xf32, #tpu.memory_space<vmem>>, %arg6: memref<256x128xbf16, #tpu.memory_space<vmem>>, %arg7: memref<1x128xf32, #tpu.memory_space<vmem>>, %arg8: memref<1x128xf32, #tpu.memory_space<vmem>>, %arg9: memref<1x128xf32, #tpu.memory_space<vmem>>, %arg10: memref<1x1xf32, #tpu.memory_space<vmem>>, %arg11: memref<8x1xf32, #tpu.memory_space<vmem>>) attributes {dimension_semantics = [], scalar_prefetch = 0 : i64, scratch_operands = 0 : i64, tpu.core_type = #tpu.core_type<tc>} {
    %c0 = arith.constant 0 : index
    %c0_0 = arith.constant 0 : index
    %0 = vector.load %arg0[%c0, %c0_0] : memref<8x16xf32, #tpu.memory_space<vmem>>, vector<8x16xf32>
    %1 = arith.truncf %0 : vector<8x16xf32> to vector<8x16xbf16>
    %c0_1 = arith.constant 0 : index
    %c0_2 = arith.constant 0 : index
    %2 = vector.load %arg1[%c0_1, %c0_2] : memref<8x1xf32, #tpu.memory_space<vmem>>, vector<8x1xf32>
    %c0_3 = arith.constant 0 : index
    %c0_4 = arith.constant 0 : index
    %3 = vector.load %arg2[%c0_3, %c0_4] : memref<16x256xbf16, #tpu.memory_space<vmem>>, vector<16x256xbf16>
    %cst = arith.constant dense<0.000000e+00> : vector<8x256xf32>
    %4 = tpu.matmul %1, %3, %cst {dimension_numbers = #tpu.dot_dimension_numbers<[1], [0], [0], [1], [0, 0, 1, 1], [], []>} : vector<8x16xbf16>, vector<16x256xbf16>, vector<8x256xf32> -> vector<8x256xf32>
    %c0_5 = arith.constant 0 : index
    %c0_6 = arith.constant 0 : index
    %5 = vector.load %arg3[%c0_5, %c0_6] : memref<1x256xf32, #tpu.memory_space<vmem>>, vector<1x256xf32>
    %6 = vector.broadcast %2 : vector<8x1xf32> to vector<8x256xf32>
    %7 = vector.broadcast %5 : vector<1x256xf32> to vector<8x256xf32>
    %8 = arith.mulf %6, %7 : vector<8x256xf32>
    %9 = arith.addf %4, %8 : vector<8x256xf32>
    %cst_7 = arith.constant dense<0.000000e+00> : vector<256xf32>
    %10 = vector.multi_reduction <add>, %9, %cst_7 [0] : vector<8x256xf32> to vector<256xf32>
    %11 = vector.shape_cast %10 : vector<256xf32> to vector<1x256xf32>
    %cst_8 = arith.constant 1.250000e-01 : f32
    %12 = vector.broadcast %cst_8 : f32 to vector<1x256xf32>
    %13 = arith.mulf %11, %12 : vector<1x256xf32>
    %14 = vector.broadcast %13 : vector<1x256xf32> to vector<8x256xf32>
    %15 = arith.subf %9, %14 : vector<8x256xf32>
    %16 = arith.mulf %15, %15 : vector<8x256xf32>
    %cst_9 = arith.constant dense<0.000000e+00> : vector<256xf32>
    %17 = vector.multi_reduction <add>, %16, %cst_9 [0] : vector<8x256xf32> to vector<256xf32>
    %18 = vector.shape_cast %17 : vector<256xf32> to vector<1x256xf32>
    %cst_10 = arith.constant 1.250000e-01 : f32
    %19 = vector.broadcast %cst_10 : f32 to vector<1x256xf32>
    %20 = arith.mulf %18, %19 : vector<1x256xf32>
    %cst_11 = arith.constant 9.99999974E-6 : f32
    %21 = vector.broadcast %cst_11 : f32 to vector<1x256xf32>
    %22 = arith.addf %20, %21 : vector<1x256xf32>
    %23 = math.rsqrt %22 : vector<1x256xf32>
    %c0_12 = arith.constant 0 : index
    %c0_13 = arith.constant 0 : index
    %24 = vector.load %arg4[%c0_12, %c0_13] : memref<1x256xf32, #tpu.memory_space<vmem>>, vector<1x256xf32>
    %25 = arith.mulf %23, %24 : vector<1x256xf32>
    %26 = vector.broadcast %25 : vector<1x256xf32> to vector<8x256xf32>
    %27 = arith.mulf %15, %26 : vector<8x256xf32>
    %c0_14 = arith.constant 0 : index
    %c0_15 = arith.constant 0 : index
    %28 = vector.load %arg5[%c0_14, %c0_15] : memref<1x256xf32, #tpu.memory_space<vmem>>, vector<1x256xf32>
    %29 = vector.broadcast %28 : vector<1x256xf32> to vector<8x256xf32>
    %30 = arith.addf %27, %29 : vector<8x256xf32>
    %cst_16 = arith.constant 0.000000e+00 : f32
    %31 = vector.broadcast %cst_16 : f32 to vector<8x256xf32>
    %32 = arith.maximumf %30, %31 : vector<8x256xf32>
    %33 = arith.truncf %32 : vector<8x256xf32> to vector<8x256xbf16>
    %c0_17 = arith.constant 0 : index
    %c0_18 = arith.constant 0 : index
    %34 = vector.load %arg6[%c0_17, %c0_18] : memref<256x128xbf16, #tpu.memory_space<vmem>>, vector<256x128xbf16>
    %cst_19 = arith.constant dense<0.000000e+00> : vector<8x128xf32>
    %35 = tpu.matmul %33, %34, %cst_19 {dimension_numbers = #tpu.dot_dimension_numbers<[1], [0], [0], [1], [0, 0, 1, 1], [], []>} : vector<8x256xbf16>, vector<256x128xbf16>, vector<8x128xf32> -> vector<8x128xf32>
    %cst_20 = arith.constant dense<0.000000e+00> : vector<128xf32>
    %36 = vector.multi_reduction <add>, %35, %cst_20 [0] : vector<8x128xf32> to vector<128xf32>
    %37 = vector.shape_cast %36 : vector<128xf32> to vector<1x128xf32>
    %cst_21 = arith.constant 1.250000e-01 : f32
    %38 = vector.broadcast %cst_21 : f32 to vector<1x128xf32>
    %39 = arith.mulf %37, %38 : vector<1x128xf32>
    %40 = vector.broadcast %39 : vector<1x128xf32> to vector<8x128xf32>
    %41 = arith.subf %35, %40 : vector<8x128xf32>
    %42 = arith.mulf %41, %41 : vector<8x128xf32>
    %cst_22 = arith.constant dense<0.000000e+00> : vector<128xf32>
    %43 = vector.multi_reduction <add>, %42, %cst_22 [0] : vector<8x128xf32> to vector<128xf32>
    %44 = vector.shape_cast %43 : vector<128xf32> to vector<1x128xf32>
    %cst_23 = arith.constant 1.250000e-01 : f32
    %45 = vector.broadcast %cst_23 : f32 to vector<1x128xf32>
    %46 = arith.mulf %44, %45 : vector<1x128xf32>
    %cst_24 = arith.constant 9.99999974E-6 : f32
    %47 = vector.broadcast %cst_24 : f32 to vector<1x128xf32>
    %48 = arith.addf %46, %47 : vector<1x128xf32>
    %49 = math.rsqrt %48 : vector<1x128xf32>
    %c0_25 = arith.constant 0 : index
    %c0_26 = arith.constant 0 : index
    %50 = vector.load %arg7[%c0_25, %c0_26] : memref<1x128xf32, #tpu.memory_space<vmem>>, vector<1x128xf32>
    %51 = arith.mulf %49, %50 : vector<1x128xf32>
    %52 = vector.broadcast %51 : vector<1x128xf32> to vector<8x128xf32>
    %53 = arith.mulf %41, %52 : vector<8x128xf32>
    %c0_27 = arith.constant 0 : index
    %c0_28 = arith.constant 0 : index
    %54 = vector.load %arg8[%c0_27, %c0_28] : memref<1x128xf32, #tpu.memory_space<vmem>>, vector<1x128xf32>
    %55 = vector.broadcast %54 : vector<1x128xf32> to vector<8x128xf32>
    %56 = arith.addf %53, %55 : vector<8x128xf32>
    %cst_29 = arith.constant 0.000000e+00 : f32
    %57 = vector.broadcast %cst_29 : f32 to vector<8x128xf32>
    %58 = arith.maximumf %56, %57 : vector<8x128xf32>
    %c0_30 = arith.constant 0 : index
    %c0_31 = arith.constant 0 : index
    %59 = vector.load %arg9[%c0_30, %c0_31] : memref<1x128xf32, #tpu.memory_space<vmem>>, vector<1x128xf32>
    %60 = vector.broadcast %59 : vector<1x128xf32> to vector<8x128xf32>
    %61 = arith.mulf %58, %60 : vector<8x128xf32>
    %cst_32 = arith.constant dense<0.000000e+00> : vector<8xf32>
    %62 = vector.multi_reduction <add>, %61, %cst_32 [1] : vector<8x128xf32> to vector<8xf32>
    %63 = vector.shape_cast %62 : vector<8xf32> to vector<8x1xf32>
    %c0_33 = arith.constant 0 : index
    %c0_34 = arith.constant 0 : index
    %64 = vector.load %arg10[%c0_33, %c0_34] : memref<1x1xf32, #tpu.memory_space<vmem>>, vector<1x1xf32>
    %65 = vector.broadcast %64 : vector<1x1xf32> to vector<8x1xf32>
    %66 = arith.addf %63, %65 : vector<8x1xf32>
    %67 = arith.negf %66 : vector<8x1xf32>
    %68 = math.exp %67 : vector<8x1xf32>
    %cst_35 = arith.constant 1.000000e+00 : f32
    %69 = vector.broadcast %cst_35 : f32 to vector<8x1xf32>
    %70 = arith.addf %69, %68 : vector<8x1xf32>
    %71 = arith.divf %69, %70 : vector<8x1xf32>
    %c0_36 = arith.constant 0 : index
    %c0_37 = arith.constant 0 : index
    %72 = vector.load %arg11[%c0_36, %c0_37] : memref<8x1xf32, #tpu.memory_space<vmem>>, vector<8x1xf32>
    tpu.vector_store %arg11[%c0_36, %c0_37], %71 {strides = array<i32>} : memref<8x1xf32, #tpu.memory_space<vmem>>, vector<8x1xf32>,
    return
  }
}

</mosaic_0001>

<llo_original>
// kernel: tpu_custom_call.1
$region0: #{tpu_custom_call.1}
  #allocation0 [shape = 'u32[]', space=smem, size = 0x4, offset = 0x4, fixed_abs, tag = 'smem constant byte address 0x4 - core index']
  #allocation1 [shape = 'u32[144,128]{1,0:T(1,128)}', space=vmem, size = 0x12000, scoped, tag = 'internal scratch']
  #allocation2 [shape = 'f32[1,1]{1,0:T(1,128)S(1)}', space=vmem, size = 0x200, scoped, tag = 'scoped memory for tpu_custom_call.1']
  %s0 = inlined_call_operand.hbm [shape: f32[8,16], index: 0, kind: input, shape index: {}]
  %s1 = inlined_call_operand.vmem [shape: f32[8,1], index: 1, kind: input, shape index: {}]
  %s2 = inlined_call_operand.vmem [shape: bf16[16,256], index: 2, kind: input, shape index: {}]
  %s3 = inlined_call_operand.vmem [shape: f32[1,256], index: 3, kind: input, shape index: {}]
  %s4 = inlined_call_operand.vmem [shape: f32[1,256], index: 4, kind: input, shape index: {}]
  %s5 = inlined_call_operand.vmem [shape: f32[1,256], index: 5, kind: input, shape index: {}]
  %s6 = inlined_call_operand.hbm [shape: bf16[256,128], index: 6, kind: input, shape index: {}]
  %s7 = inlined_call_operand.vmem [shape: f32[1,128], index: 7, kind: input, shape index: {}]
  %s8 = inlined_call_operand.vmem [shape: f32[1,128], index: 8, kind: input, shape index: {}]
  %s9 = inlined_call_operand.vmem [shape: f32[1,128], index: 9, kind: input, shape index: {}]
  %s10 = inlined_call_operand.<no memory space> [shape: f32[1,1], index: 10, kind: input, shape index: {}]
  %s11 = inlined_call_operand.vmem [shape: f32[8,1], index: 11, kind: output, shape index: {}]
  %s12 = sld [smem:[#allocation0]]
  $region62: #{tpu_custom_call.1} parent=0
    _
  %s14 = ssub.s32 1, %s12
  %s15 = scalar_select 0, %s14, %s12
  %v16 = vstv %s10
  %17 = vst [vmem:[#allocation2] sm:$0x1] %v16
  $region1: #{tpu_custom_call.1} parent=0
    #allocation3 [shape = 'u8[4096]{0}', space=vmem, size = 0x1000, scoped, tag = 'input window, operand 0, single buffered']
    #allocation4 [shape = 's32[1]{0}', space=sflag, size = 0x4, scoped, tag = 'scoped memory for tpu_custom_call.1']
    #allocation5 [shape = 'u8[65536]{0}', space=vmem, size = 0x10000, scoped, tag = 'input window, operand 6, single buffered']
    #allocation6 [shape = 's32[1]{0}', space=sflag, size = 0x4, scoped, tag = 'scoped memory for tpu_custom_call.1']
    %18 = vsyncpa [#allocation4], 0
    %19 = vsyncpa [#allocation6], 0
    // Predicated region
    $region2: #{tpu_custom_call.1} parent=1 // pred_check
      _
    $region3: #{tpu_custom_call.1} parent=1 // pred_check_branch
      %21 = sbr.rel (0) target = $region5
    $region4: #{tpu_custom_call.1} parent=1 // pred_region
      %s23 = ssub.s32 128, 128
      %24 = vsyncadd [#allocation4], %s23
      %s26 = sshll.u32 [#allocation3], 4
      %s27 = int_to_ptr.vmem [resolvable:$true] %s26
      %29 = dma.hbm_to_vmem [thread:$0]  %s0, 128, %s27, [#allocation4]
    $region5: #{tpu_custom_call.1} parent=1 // pred_fallthru
      _
    // Predicated region
    $region6: #{tpu_custom_call.1} parent=1 // pred_check
      _
    $region7: #{tpu_custom_call.1} parent=1 // pred_check_branch
      %31 = sbr.rel (0) target = $region9
    $region8: #{tpu_custom_call.1} parent=1 // pred_region
      _
    $region9: #{tpu_custom_call.1} parent=1 // pred_fallthru
      _
    // Predicated region
    $region10: #{tpu_custom_call.1} parent=1 // pred_check
      _
    $region11: #{tpu_custom_call.1} parent=1 // pred_check_branch
      %33 = sbr.rel (0) target = $region13
    $region12: #{tpu_custom_call.1} parent=1 // pred_region
      _
    $region13: #{tpu_custom_call.1} parent=1 // pred_fallthru
      _
    // Predicated region
    $region14: #{tpu_custom_call.1} parent=1 // pred_check
      _
    $region15: #{tpu_custom_call.1} parent=1 // pred_check_branch
      %35 = sbr.rel (0) target = $region17
    $region16: #{tpu_custom_call.1} parent=1 // pred_region
      _
    $region17: #{tpu_custom_call.1} parent=1 // pred_fallthru
      _
    // Predicated region
    $region18: #{tpu_custom_call.1} parent=1 // pred_check
      _
    $region19: #{tpu_custom_call.1} parent=1 // pred_check_branch
      %37 = sbr.rel (0) target = $region21
    $region20: #{tpu_custom_call.1} parent=1 // pred_region
      _
    $region21: #{tpu_custom_call.1} parent=1 // pred_fallthru
      _
    // Predicated region
    $region22: #{tpu_custom_call.1} parent=1 // pred_check
      _
    $region23: #{tpu_custom_call.1} parent=1 // pred_check_branch
      %39 = sbr.rel (0) target = $region25
    $region24: #{tpu_custom_call.1} parent=1 // pred_region
      _
    $region25: #{tpu_custom_call.1} parent=1 // pred_fallthru
      _
    // Predicated region
    $region26: #{tpu_custom_call.1} parent=1 // pred_check
      _
    $region27: #{tpu_custom_call.1} parent=1 // pred_check_branch
      %41 = sbr.rel (0) target = $region29
    $region28: #{tpu_custom_call.1} parent=1 // pred_region
      %s43 = ssub.s32 2048, 2048
      %44 = vsyncadd [#allocation6], %s43
      %s45 = sshll.u32 [#allocation5], 4
      %s46 = int_to_ptr.vmem [resolvable:$true] %s45
      %51 = dma.hbm_to_vmem [thread:$0]  %s6, 2048, %s46, [#allocation6], 64, 64, 4
    $region29: #{tpu_custom_call.1} parent=1 // pred_fallthru
      _
    // Predicated region
    $region30: #{tpu_custom_call.1} parent=1 // pred_check
      _
    $region31: #{tpu_custom_call.1} parent=1 // pred_check_branch
      %53 = sbr.rel (0) target = $region33
    $region32: #{tpu_custom_call.1} parent=1 // pred_region
      _
    $region33: #{tpu_custom_call.1} parent=1 // pred_fallthru
      _
    // Predicated region
    $region34: #{tpu_custom_call.1} parent=1 // pred_check
      _
    $region35: #{tpu_custom_call.1} parent=1 // pred_check_branch
      %55 = sbr.rel (0) target = $region37
    $region36: #{tpu_custom_call.1} parent=1 // pred_region
      _
    $region37: #{tpu_custom_call.1} parent=1 // pred_fallthru
      _
    // Predicated region
    $region38: #{tpu_custom_call.1} parent=1 // pred_check
      _
    $region39: #{tpu_custom_call.1} parent=1 // pred_check_branch
      %57 = sbr.rel (0) target = $region41
    $region40: #{tpu_custom_call.1} parent=1 // pred_region
      _
    $region41: #{tpu_custom_call.1} parent=1 // pred_fallthru
      _
    // Predicated region
    $region42: #{tpu_custom_call.1} parent=1 // pred_check
      _
    $region43: #{tpu_custom_call.1} parent=1 // pred_check_branch
      %59 = sbr.rel (0) target = $region45
    $region44: #{tpu_custom_call.1} parent=1 // pred_region
      _
    $region45: #{tpu_custom_call.1} parent=1 // pred_fallthru
      _
    // Predicated region
    $region46: #{tpu_custom_call.1} parent=1 // pred_check
      _
    $region47: #{tpu_custom_call.1} parent=1 // pred_check_branch
      %61 = sbr.rel (0) target = $region49
    $region48: #{tpu_custom_call.1} parent=1 // pred_region
      %62 = dma.done [#allocation4], 128
    $region49: #{tpu_custom_call.1} parent=1 // pred_fallthru
      _
    // Predicated region
    $region50: #{tpu_custom_call.1} parent=1 // pred_check
      _
    $region51: #{tpu_custom_call.1} parent=1 // pred_check_branch
      %64 = sbr.rel (0) target = $region53
    $region52: #{tpu_custom_call.1} parent=1 // pred_region
      %65 = dma.done [#allocation6], 2048
    $region53: #{tpu_custom_call.1} parent=1 // pred_fallthru
      _
    %v67 = vld [vmem:[#allocation3] sm:$0xff]
    %v68 = vpack.c.bf16 %v67, %v67
    %v69 = vld [vmem:[%s1] sm:$0xff]
    %v70 = vld [vmem:[%s2] sm:$0xff]
    %v71 = vld [vmem:[%s2 + $0x8] sm:$0xff]
    %v72 = vld [vmem:[%s3] sm:$0x3]
    %74 = vset.pattern.permute.xlu0 0
    %75 = vperm.xlu0 %74, %v69
    %v76 = vpop.permute.xlu0 %75
    %v79 = vlaneseq
    %v80 = vshrl.u32 %v79, 7
    %v81 = vsub.s32 0, %v80
    %v82 = vrot.slane %v72, %v81
    %v83 = vlaneseq
    %v84 = vshrl.u32 %v83, 7
    %v85 = vsub.s32 1, %v84
    %v86 = vrot.slane %v72, %v85
    %v89 = vmul.f32 %v76, %v82
    %v90 = vmul.f32 %v76, %v86
    %v93 = vunpack.c.l.b16 %v70
    %v94 = vunpack.c.h.b16 %v70
    %v95 = vunpack.c.l.b16 %v71
    %v96 = vunpack.c.h.b16 %v71
    %v97 = vpack.c.b16 %v95, %v93
    %v98 = vpack.c.b16 %v96, %v94
    %vm101 = vcmask 130048
    %v103 = vsel %vm101, %v68, 0
    %105 = vmatprep.subr.bf16.mxu0 %v98
    %106 = vmatpush1.bf16.msra.mxu0 %v97
    %107 = vmatprep.subr.bf16.mxu0 0
    %108 = vmatpush1.bf16.msra.mxu0 0
    %109 = vmatprep.subr.bf16.mxu0 0
    %110 = vmatpush1.bf16.msra.mxu0 0
    %111 = vmatprep.subr.bf16.mxu0 0
    %112 = vmatpush1.bf16.msra.mxu0 0
    %113 = vmatprep.subr.bf16.mxu0 0
    %114 = vmatpush1.bf16.msra.mxu0 0
    %115 = vmatprep.subr.bf16.mxu0 0
    %116 = vmatpush1.bf16.msra.mxu0 0
    %117 = vmatprep.subr.bf16.mxu0 0
    %118 = vmatpush1.bf16.msra.mxu0 0
    %119 = vmatprep.subr.bf16.mxu0 0
    %120 = vmatpush1.bf16.msra.mxu0 0
    %121 = vmatprep.subr.bf16.mxu0 0
    %122 = vmatpush1.bf16.msra.mxu0 0
    %123 = vmatprep.subr.bf16.mxu0 0
    %124 = vmatpush1.bf16.msra.mxu0 0
    %125 = vmatprep.subr.bf16.mxu0 0
    %126 = vmatpush1.bf16.msra.mxu0 0
    %127 = vmatprep.subr.bf16.mxu0 0
    %128 = vmatpush1.bf16.msra.mxu0 0
    %129 = vmatprep.subr.bf16.mxu0 0
    %130 = vmatpush1.bf16.msra.mxu0 0
    %131 = vmatprep.subr.bf16.mxu0 0
    %132 = vmatpush1.bf16.msra.mxu0 0
    %133 = vmatprep.subr.bf16.mxu0 0
    %134 = vmatpush1.bf16.msra.mxu0 0
    %135 = vmatprep.subr.bf16.mxu0 0
    %136 = vmatpush1.bf16.msra.mxu0 0
    %137 = vmatprep.mubr.bf16.mxu0 0
    %138 = vmatmul.mubr.bf16.gmra.mrb[0].mxu0 %v103
    %v139 = vpop.f32.mrb[0].mxu0
    %v140 = vadd.f32 %v89, %v139
    %v141 = vpop.f32.mrb[0].mxu0
    %v142 = vadd.f32 %v90, %v141
    %v143 = vpop.f32.mrb[0].mxu0
    %v144 = vpop.f32.mrb[0].mxu0
    %145 = vdwg.mxu0
    %v146 = vrot.slane %v140, 4
    %v147 = vadd.f32 %v140, %v146
    %v148 = vrot.slane %v147, 2
    %v149 = vadd.f32 %v147, %v148
    %v150 = vrot.slane %v149, 1
    %v151 = vadd.f32 %v149, %v150
    %v152 = vrot.slane %v142, 4
    %v153 = vadd.f32 %v142, %v152
    %v154 = vrot.slane %v153, 2
    %v155 = vadd.f32 %v153, %v154
    %v156 = vrot.slane %v155, 1
    %v157 = vadd.f32 %v155, %v156
    %v158 = vmul.f32 %v151, 0.125
    %v159 = vmul.f32 %v157, 0.125
    %v160 = vsub.f32 %v140, %v158
    %v161 = vsub.f32 %v142, %v159
    %v162 = vmul.f32 %v160, %v160
    %v163 = vmul.f32 %v161, %v161
    %v164 = vrot.slane %v162, 4
    %v165 = vadd.f32 %v162, %v164
    %v166 = vrot.slane %v165, 2
    %v167 = vadd.f32 %v165, %v166
    %v168 = vrot.slane %v167, 1
    %v169 = vadd.f32 %v167, %v168
    %v170 = vrot.slane %v163, 4
    %v171 = vadd.f32 %v163, %v170
    %v172 = vrot.slane %v171, 2
    %v173 = vadd.f32 %v171, %v172
    %v174 = vrot.slane %v173, 1
    %v175 = vadd.f32 %v173, %v174
    %v176 = vmul.f32 %v169, 0.125
    %v177 = vmul.f32 %v175, 0.125
    %v178 = vadd.f32 %v176, 1e-05
    %v179 = vadd.f32 %v177, 1e-05
    %v180 = vrsqrt.pop %v178
    %v181 = vrsqrt.pop %v179
    %v182 = vld [vmem:[%s4] sm:$0x3]
    %v184 = vlaneseq
    %v185 = vshrl.u32 %v184, 7
    %v186 = vsub.s32 0, %v185
    %v187 = vrot.slane %v182, %v186
    %v188 = vlaneseq
    %v189 = vshrl.u32 %v188, 7
    %v190 = vsub.s32 1, %v189
    %v191 = vrot.slane %v182, %v190
    %v194 = vmul.f32 %v180, %v187
    %v195 = vmul.f32 %v181, %v191
    %v196 = vlaneseq
    %v197 = vshrl.u32 %v196, 7
    %v198 = vsub.s32 0, %v197
    %v199 = vrot.slane %v194, %v198
    %v200 = vlaneseq
    %v201 = vshrl.u32 %v200, 7
    %v202 = vsub.s32 0, %v201
    %v203 = vrot.slane %v195, %v202
    %v204 = vmul.f32 %v160, %v199
    %v205 = vmul.f32 %v161, %v203
    %v206 = vld [vmem:[%s5] sm:$0x3]
    %v208 = vlaneseq
    %v209 = vshrl.u32 %v208, 7
    %v210 = vsub.s32 0, %v209
    %v211 = vrot.slane %v206, %v210
    %v212 = vlaneseq
    %v213 = vshrl.u32 %v212, 7
    %v214 = vsub.s32 1, %v213
    %v215 = vrot.slane %v206, %v214
    %v218 = vadd.f32 %v204, %v211
    %v219 = vadd.f32 %v205, %v215
    %v220 = vmax.f32 %v218, 0.0
    %v221 = vmax.f32 %v219, 0.0
    %v222 = vpack.c.bf16 %v220, %v220
    %v223 = vpack.c.bf16 %v221, %v221
    %v224 = vld [vmem:[#allocation5] sm:$0xf]
    %v225 = vld [vmem:[#allocation5 + $0x4] sm:$0xf]
    %v226 = vld [vmem:[#allocation5 + $0x8] sm:$0xf]
    %v227 = vld [vmem:[#allocation5 + $0xc] sm:$0xf]
    %v228 = vld [vmem:[#allocation5 + $0x10] sm:$0xf]
    %v229 = vld [vmem:[#allocation5 + $0x14] sm:$0xf]
    %v230 = vld [vmem:[#allocation5 + $0x18] sm:$0xf]
    %v231 = vld [vmem:[#allocation5 + $0x1c] sm:$0xf]
    %v232 = vld [vmem:[#allocation5 + $0x20] sm:$0xf]
    %v233 = vld [vmem:[#allocation5 + $0x24] sm:$0xf]
    %v234 = vld [vmem:[#allocation5 + $0x28] sm:$0xf]
    %v235 = vld [vmem:[#allocation5 + $0x2c] sm:$0xf]
    %v236 = vld [vmem:[#allocation5 + $0x30] sm:$0xf]
    %v237 = vld [vmem:[#allocation5 + $0x34] sm:$0xf]
    %v238 = vld [vmem:[#allocation5 + $0x38] sm:$0xf]
    %v239 = vld [vmem:[#allocation5 + $0x3c] sm:$0xf]
    %v240 = vld [vmem:[#allocation5 + $0x40] sm:$0xf]
    %v241 = vld [vmem:[#allocation5 + $0x44] sm:$0xf]
    %v242 = vld [vmem:[#allocation5 + $0x48] sm:$0xf]
    %v243 = vld [vmem:[#allocation5 + $0x4c] sm:$0xf]
    %v244 = vld [vmem:[#allocation5 + $0x50] sm:$0xf]
    %v245 = vld [vmem:[#allocation5 + $0x54] sm:$0xf]
    %v246 = vld [vmem:[#allocation5 + $0x58] sm:$0xf]
    %v247 = vld [vmem:[#allocation5 + $0x5c] sm:$0xf]
    %v248 = vld [vmem:[#allocation5 + $0x60] sm:$0xf]
    %v249 = vld [vmem:[#allocation5 + $0x64] sm:$0xf]
    %v250 = vld [vmem:[#allocation5 + $0x68] sm:$0xf]
    %v251 = vld [vmem:[#allocation5 + $0x6c] sm:$0xf]
    %v252 = vld [vmem:[#allocation5 + $0x70] sm:$0xf]
    %v253 = vld [vmem:[#allocation5 + $0x74] sm:$0xf]
    %v254 = vld [vmem:[#allocation5 + $0x78] sm:$0xf]
    %v255 = vld [vmem:[#allocation5 + $0x7c] sm:$0xf]
    %v288 = vunpack.c.l.b16 %v224
    %v289 = vunpack.c.l.b16 %v225
    %v290 = vunpack.c.l.b16 %v226
    %v291 = vunpack.c.l.b16 %v227
    %v292 = vunpack.c.l.b16 %v228
    %v293 = vunpack.c.l.b16 %v229
    %v294 = vunpack.c.l.b16 %v230
    %v295 = vunpack.c.l.b16 %v231
    %v296 = vunpack.c.l.b16 %v232
    %v297 = vunpack.c.l.b16 %v233
    %v298 = vunpack.c.l.b16 %v234
    %v299 = vunpack.c.l.b16 %v235
    %v300 = vunpack.c.l.b16 %v236
    %v301 = vunpack.c.l.b16 %v237
    %v302 = vunpack.c.l.b16 %v238
    %v303 = vunpack.c.l.b16 %v239
    %v304 = vunpack.c.l.b16 %v240
    %v305 = vunpack.c.l.b16 %v241
    %v306 = vunpack.c.l.b16 %v242
    %v307 = vunpack.c.l.b16 %v243
    %v308 = vunpack.c.l.b16 %v244
    %v309 = vunpack.c.l.b16 %v245
    %v310 = vunpack.c.l.b16 %v246
    %v311 = vunpack.c.l.b16 %v247
    %v312 = vunpack.c.l.b16 %v248
    %v313 = vunpack.c.l.b16 %v249
    %v314 = vunpack.c.l.b16 %v250
    %v315 = vunpack.c.l.b16 %v251
    %v316 = vunpack.c.l.b16 %v252
    %v317 = vunpack.c.l.b16 %v253
    %v318 = vunpack.c.l.b16 %v254
    %v319 = vunpack.c.l.b16 %v255
    %v320 = vpack.c.b16 %v289, %v288
    %v321 = vpack.c.b16 %v291, %v290
    %v322 = vpack.c.b16 %v293, %v292
    %v323 = vpack.c.b16 %v295, %v294
    %v324 = vpack.c.b16 %v297, %v296
    %v325 = vpack.c.b16 %v299, %v298
    %v326 = vpack.c.b16 %v301, %v300
    %v327 = vpack.c.b16 %v303, %v302
    %v328 = vpack.c.b16 %v305, %v304
    %v329 = vpack.c.b16 %v307, %v306
    %v330 = vpack.c.b16 %v309, %v308
    %v331 = vpack.c.b16 %v311, %v310
    %v332 = vpack.c.b16 %v313, %v312
    %v333 = vpack.c.b16 %v315, %v314
    %v334 = vpack.c.b16 %v317, %v316
    %v335 = vpack.c.b16 %v319, %v318
    %352 = vmatprep.subr.bf16.mxu0 0
    %353 = vmatpush1.bf16.msra.mxu0 %v320
    %354 = vmatprep.subr.bf16.mxu0 0
    %355 = vmatpush1.bf16.msra.mxu0 %v321
    %356 = vmatprep.subr.bf16.mxu0 0
    %357 = vmatpush1.bf16.msra.mxu0 %v322
    %358 = vmatprep.subr.bf16.mxu0 0
    %359 = vmatpush1.bf16.msra.mxu0 %v323
    %360 = vmatprep.subr.bf16.mxu0 0
    %361 = vmatpush1.bf16.msra.mxu0 %v324
    %362 = vmatprep.subr.bf16.mxu0 0
    %363 = vmatpush1.bf16.msra.mxu0 %v325
    %364 = vmatprep.subr.bf16.mxu0 0
    %365 = vmatpush1.bf16.msra.mxu0 %v326
    %366 = vmatprep.subr.bf16.mxu0 0
    %367 = vmatpush1.bf16.msra.mxu0 %v327
    %368 = vmatprep.subr.bf16.mxu0 0
    %369 = vmatpush1.bf16.msra.mxu0 %v328
    %370 = vmatprep.subr.bf16.mxu0 0
    %371 = vmatpush1.bf16.msra.mxu0 %v329
    %372 = vmatprep.subr.bf16.mxu0 0
    %373 = vmatpush1.bf16.msra.mxu0 %v330
    %374 = vmatprep.subr.bf16.mxu0 0
    %375 = vmatpush1.bf16.msra.mxu0 %v331
    %376 = vmatprep.subr.bf16.mxu0 0
    %377 = vmatpush1.bf16.msra.mxu0 %v332
    %378 = vmatprep.subr.bf16.mxu0 0
    %379 = vmatpush1.bf16.msra.mxu0 %v333
    %380 = vmatprep.subr.bf16.mxu0 0
    %381 = vmatpush1.bf16.msra.mxu0 %v334
    %382 = vmatprep.subr.bf16.mxu0 0
    %383 = vmatpush1.bf16.msra.mxu0 %v335
    %384 = vmatprep.mubr.bf16.mxu0 %v223
    %385 = vmatmul.mubr.bf16.gmra.mrb[0].mxu0 %v222
    %v386 = vpop.f32.mrb[0].mxu0
    %v387 = vadd.f32 0.0, %v386
    %v388 = vpop.f32.mrb[0].mxu0
    %v389 = vpop.f32.mrb[0].mxu0
    %v390 = vpop.f32.mrb[0].mxu0
    %391 = vdwg.mxu0
    %v392 = vrot.slane %v387, 4
    %v393 = vadd.f32 %v387, %v392
    %v394 = vrot.slane %v393, 2
    %v395 = vadd.f32 %v393, %v394
    %v396 = vrot.slane %v395, 1
    %v397 = vadd.f32 %v395, %v396
    %v398 = vmul.f32 %v397, 0.125
    %v399 = vsub.f32 %v387, %v398
    %v400 = vmul.f32 %v399, %v399
    %v401 = vrot.slane %v400, 4
    %v402 = vadd.f32 %v400, %v401
    %v403 = vrot.slane %v402, 2
    %v404 = vadd.f32 %v402, %v403
    %v405 = vrot.slane %v404, 1
    %v406 = vadd.f32 %v404, %v405
    %v407 = vmul.f32 %v406, 0.125
    %v408 = vadd.f32 %v407, 1e-05
    %v409 = vrsqrt.pop %v408
    %v410 = vld [vmem:[%s7] sm:$0x1]
    %v411 = vmul.f32 %v409, %v410
    %v412 = vlaneseq
    %v413 = vshrl.u32 %v412, 7
    %v414 = vsub.s32 0, %v413
    %v415 = vrot.slane %v411, %v414
    %v416 = vmul.f32 %v399, %v415
    %v417 = vld [vmem:[%s8] sm:$0x1]
    %v419 = vlaneseq
    %v420 = vshrl.u32 %v419, 7
    %v421 = vsub.s32 0, %v420
    %v422 = vrot.slane %v417, %v421
    %v424 = vadd.f32 %v416, %v422
    %v425 = vmax.f32 %v424, 0.0
    %v426 = vld [vmem:[%s9] sm:$0x1]
    %v428 = vlaneseq
    %v429 = vshrl.u32 %v428, 7
    %v430 = vsub.s32 0, %v429
    %v431 = vrot.slane %v426, %v430
    %v433 = vmul.f32 %v425, %v431
    %434 = vadd.xlane.f32.xlu0 %v433
    %v435 = vpop.xlane.xlu0 %434
    %v436 = vld [vmem:[#allocation2] sm:$0x1]
    %v438 = vlaneseq
    %v439 = vshrl.u32 %v438, 7
    %v440 = vsub.s32 0, %v439
    %v441 = vrot.slane %v436, %v440
    %v443 = vadd.f32 %v435, %v441
    %v444 = vxor.u32 %v443, 2147483648
    %v445 = vmul.f32 %v444, 1.442695
    %v446 = vpow.pop %v445
    %v447 = vadd.f32 %v446, 1.0
    %v448 = vrcp.pop %v447
    %v449 = vmul.f32 1.0, %v448
    %vm450 = vcmask 7168
    %451 = vst.msk [vmem:[%s11] sm:$0xff] %vm450, %v449
    // Predicated region
    $region54: #{tpu_custom_call.1} parent=1 // pred_check
      _
    $region55: #{tpu_custom_call.1} parent=1 // pred_check_branch
      %453 = sbr.rel (0) target = $region57
    $region56: #{tpu_custom_call.1} parent=1 // pred_region
      _
    $region57: #{tpu_custom_call.1} parent=1 // pred_fallthru
      _
    // Predicated region
    $region58: #{tpu_custom_call.1} parent=1 // pred_check
      _
    $region59: #{tpu_custom_call.1} parent=1 // pred_check_branch
      %455 = sbr.rel (0) target = $region61
    $region60: #{tpu_custom_call.1} parent=1 // pred_region
      _
    $region61: #{tpu_custom_call.1} parent=1 // pred_fallthru
      _
    %456 = vsyncpa [#allocation4], 1
    %457 = vsyncpa [#allocation6], 1

</llo_original>
